<compile_context>
chip_gen: v6e
topology: v6e:2x2x1
jax: 0.10.0
libtpu: 0.0.40
codegen_flags: <defaults>
</compile_context>

<pallas_src>
import jax
import jax.numpy as jnp
from jax import lax
from jax.experimental import pallas as pl
from jax.experimental.pallas import tpu as pltpu


def dwconv_kernel(x_ref, top_ref, bot_ref, w_ref, b_ref, o_ref):
    # x_ref:   (1, TH, W, TC)  current row tile of the image       (VMEM)
    # top_ref: (1, 1,  W, TC)  row just above the tile (clamped)   (VMEM)
    # bot_ref: (1, 1,  W, TC)  row just below the tile (clamped)   (VMEM)
    # w_ref:   (3, 3, TC)      per-channel 3x3 taps                (VMEM)
    # b_ref:   (1, TC)         per-channel bias                    (VMEM)
    # o_ref:   (1, TH, W, TC)  output row tile                     (VMEM)
    f32 = jnp.float32
    r = pl.program_id(1)
    nr = pl.num_programs(1)
    TH, W, TC = o_ref.shape[1], o_ref.shape[2], o_ref.shape[3]

    # Halo rows outside the image -> zero, via a scalar predicate (no
    # full-tile iota/compare/select).  nr == 1 zeroes both (correct padding).
    top = top_ref[0].astype(f32) * (r > 0).astype(f32)          # (1, W, TC)
    bot = bot_ref[0].astype(f32) * (r < nr - 1).astype(f32)     # (1, W, TC)

    # Widen the main tile once; every tap below works on this f32 copy.
    c = x_ref[0].astype(f32)                                    # (TH, W, TC)

    # Tiny (1, W, 1) column masks, broadcast over rows and lanes.
    col = lax.broadcasted_iota(jnp.int32, (1, W, 1), 1)
    mask_l = (col >= 1).astype(f32)       # kills wrapped column at x == 0
    mask_r = (col <= W - 2).astype(f32)   # kills wrapped column at x == W - 1

    def shift(a):
        # dx = -1 / 0 / +1 views; the rolls ride the XLU slot (has slack here).
        a_m1 = pltpu.roll(a, shift=1, axis=1) * mask_l
        a_p1 = pltpu.roll(a, shift=W - 1, axis=1) * mask_r
        return a_m1, a, a_p1

    cm1, c0, cp1 = shift(c)
    tm1, t0, tp1 = shift(top)
    bm1, b0, bp1 = shift(bot)

    # Per-channel taps / bias widened once.
    w = w_ref[...].astype(f32)            # (3, 3, TC)
    bias = b_ref[0].astype(f32)           # (TC,)

    def taps(a_m1, a_0, a_p1, kh):
        return a_m1 * w[kh, 0] + a_0 * w[kh, 1] + a_p1 * w[kh, 2]

    out_dtype = o_ref.dtype
    if TH == 1:
        out = bias + taps(tm1, t0, tp1, 0) + taps(cm1, c0, cp1, 1) \
            + taps(bm1, b0, bp1, 2)
        o_ref[0] = out.astype(out_dtype)
    else:
        # Output row 0 uses (top, c[0], c[1]).
        o_ref[0, 0:1] = (bias
                         + taps(tm1, t0, tp1, 0)
                         + taps(cm1[0:1], c0[0:1], cp1[0:1], 1)
                         + taps(cm1[1:2], c0[1:2], cp1[1:2], 2)).astype(out_dtype)
        # Interior rows i = 1..TH-2 use (c[i-1], c[i], c[i+1]); the row shifts
        # are static outer-dim slices (no concatenate copy, no extra temps).
        if TH > 2:
            o_ref[0, 1:TH - 1] = (
                bias
                + taps(cm1[0:TH - 2], c0[0:TH - 2], cp1[0:TH - 2], 0)
                + taps(cm1[1:TH - 1], c0[1:TH - 1], cp1[1:TH - 1], 1)
                + taps(cm1[2:TH], c0[2:TH], cp1[2:TH], 2)).astype(out_dtype)
        # Output row TH-1 uses (c[TH-2], c[TH-1], bot).
        o_ref[0, TH - 1:TH] = (
            bias
            + taps(cm1[TH - 2:TH - 1], c0[TH - 2:TH - 1], cp1[TH - 2:TH - 1], 0)
            + taps(cm1[TH - 1:TH], c0[TH - 1:TH], cp1[TH - 1:TH], 1)
            + taps(bm1, b0, bp1, 2)).astype(out_dtype)


def _divisors_desc(n):
    return [d for d in range(n, 0, -1) if n % d == 0]


def _largest_divisor_at_most(n, cap):
    for d in range(max(min(n, cap), 1), 0, -1):
        if n % d == 0:
            return d
    return 1


def _vmem_budget_bytes():
    """Generation-aware VMEM budget (v7x: 64 MiB/TC, v5e/v6e: 128 MiB)."""
    cap = 128 * 1024 * 1024
    try:
        info = pltpu.get_tpu_info()
        cap = int(getattr(info, "vmem_capacity_bytes", cap))
    except Exception:
        pass
    return min(int(cap * 0.7), 96 * 1024 * 1024)


def _est_step_vmem(th, w, tc, in_itemsize, out_itemsize):
    """Honest per-step VMEM estimate: 2x double-buffered main/out blocks,
    double-buffered halo rows, weights/bias, plus ~6 full-tile f32 temps
    (widened tile, two column shifts, fused partial sums)."""
    blk_in = th * w * tc * in_itemsize
    blk_out = th * w * tc * out_itemsize
    halo = w * tc * in_itemsize
    f32_tile = th * w * tc * 4
    small = 2 * (10 * tc * 4)
    return 2 * blk_in + 2 * blk_out + 4 * halo + 6 * f32_tile + small


def _pick_tiles(B, H, W, C, itemsize, budget):
    """TC: largest 128-multiple divisor of C (contiguous DMA, lane-dense
    stores).  TH: largest divisor of H whose estimated live VMEM fits the
    budget.  Force >= 2 grid steps so both v7x TensorCores get work."""
    tc_options = [d for d in range(C, 127, -128) if C % d == 0] or [C]
    for tc in tc_options:
        for th in _divisors_desc(H):
            if _est_step_vmem(th, W, tc, itemsize, itemsize) <= budget:
                if B * (H // th) * (C // tc) < 2 and H > 1:
                    th = _largest_divisor_at_most(H, max(H // 2, 1))
                return th, tc
    return 1, tc_options[-1]


def dwconv_pallas(x, weight, bias, H, W, row_tile=None, channel_tile=None):
    """Depthwise 3x3 conv, stride 1, padding 1 (DWConv.forward).

    x: (B, N, C) tokens with N == H*W.  weight: (3, 3, C).  bias: (C,).
    Returns (B, N, C)."""
    B, N, C = x.shape
    assert N == H * W
    orig_C = C

    # Lane-dense channels: pad C to a multiple of 128 (zero taps/bias on the
    # padding; sliced off at the end) instead of ragged lane tiles.
    pad_c = (-C) % 128
    if pad_c:
        x = jnp.pad(x, ((0, 0), (0, 0), (0, pad_c)))
        weight = jnp.pad(weight, ((0, 0), (0, 0), (0, pad_c)))
        bias = jnp.pad(bias, ((0, pad_c),))
        C = C + pad_c

    x_img = x.reshape(B, H, W, C)              # free metadata reshape -> NHWC
    itemsize = jnp.dtype(x.dtype).itemsize
    budget = _vmem_budget_bytes()

    th_auto, tc_auto = _pick_tiles(B, H, W, C, itemsize, budget)
    TH = row_tile if row_tile is not None else th_auto
    TC = channel_tile if channel_tile is not None else tc_auto
    assert H % TH == 0 and C % TC == 0 and TC % 128 == 0
    nr, nc = H // TH, C // TC

    bias2d = bias.reshape(1, C)

    est = _est_step_vmem(TH, W, TC, itemsize, itemsize)
    vmem_limit = int(min(budget, max(2 * est, 16 * 1024 * 1024)))

    cost = pl.CostEstimate(
        flops=2 * 9 * B * H * W * C,
        transcendentals=0,
        bytes_accessed=(2 * B * H * W * C + 2 * B * nr * W * C) * itemsize
        + 10 * C * jnp.dtype(weight.dtype).itemsize,
    )

    out = pl.pallas_call(
        dwconv_kernel,
        out_shape=jax.ShapeDtypeStruct((B, H, W, C), x.dtype),
        grid_spec=pltpu.PrefetchScalarGridSpec(
            num_scalar_prefetch=0,
            grid=(B, nr, nc),
            in_specs=[
                # current row tile (fully contiguous when TC == C)
                pl.BlockSpec((1, TH, W, TC), lambda b, r, c: (b, r, 0, c)),
                # halo row above (clamped at the top border; zeroed in-kernel)
                pl.BlockSpec((1, 1, W, TC),
                             lambda b, r, c: (b, jnp.maximum(r * TH - 1, 0), 0, c)),
                # halo row below (clamped at the bottom border; zeroed in-kernel)
                pl.BlockSpec((1, 1, W, TC),
                             lambda b, r, c: (b, jnp.minimum(r * TH + TH, H - 1), 0, c)),
                pl.BlockSpec((3, 3, TC), lambda b, r, c: (0, 0, c)),
                pl.BlockSpec((1, TC), lambda b, r, c: (0, c)),
            ],
            out_specs=pl.BlockSpec((1, TH, W, TC), lambda b, r, c: (b, r, 0, c)),
        ),
        compiler_params=pltpu.CompilerParams(
            dimension_semantics=("parallel", "parallel", "parallel"),
            vmem_limit_bytes=vmem_limit,
        ),
        cost_estimate=cost,
    )(x_img, x_img, x_img, weight, bias2d)

    out = out.reshape(B, N, C)
    if pad_c:
        out = out[:, :, :orig_C]
    return out


def dwconv_reference(x, weight, bias, H, W):
    """Pure-JAX reference using lax.conv_general_dilated (depthwise)."""
    B, N, C = x.shape
    x_img = x.reshape(B, H, W, C)
    rhs = weight.reshape(3, 3, 1, C)  # HWIO with I=1 (depthwise)
    out = lax.conv_general_dilated(
        x_img, rhs,
        window_strides=(1, 1),
        padding="SAME",
        dimension_numbers=("NHWC", "HWIO", "NHWC"),
        feature_group_count=C,
    )
    out = out + bias[None, None, None, :]
    return out.reshape(B, N, C)


if __name__ == "__main__":
    # Small shapes consistent with DWConv.forward: x is (B, N, C), N = H*W.
    B, H, W, C = 2, 16, 16, 256
    N = H * W

    key = jax.random.PRNGKey(0)
    kx, kw_key, kb = jax.random.split(key, 3)

    x = jax.random.normal(kx, (B, N, C), dtype=jnp.float32)
    # PyTorch nn.Conv2d(dim, dim, 3, groups=dim): weight (dim, 1, 3, 3), bias (dim,)
    w_torch = jax.random.normal(kw_key, (C, 1, 3, 3), dtype=jnp.float32) * 0.1
    weight = jnp.transpose(w_torch[:, 0, :, :], (1, 2, 0))   # (3, 3, C)
    bias = jax.random.normal(kb, (C,), dtype=jnp.float32) * 0.1

    ref = dwconv_reference(x, weight, bias, H, W)

    # Explicit small tiles: exercises the row-halo path (nr > 1) and channel
    # tiling (nc > 1).
    out = dwconv_pallas(x, weight, bias, H, W, row_tile=4, channel_tile=128)
    out = jax.block_until_ready(out)
    assert out.shape == (B, N, C)
    assert jnp.allclose(out, ref, atol=1e-4, rtol=1e-4), "mismatch (tiled)"

    # Auto-picked tiles (TC = C, contiguous DMA; single row tile per image).
    out2 = jax.block_until_ready(dwconv_pallas(x, weight, bias, H, W))
    assert jnp.allclose(out2, ref, atol=1e-4, rtol=1e-4), "mismatch (auto tile)"

    print("KERNEL_OK")
</pallas_src>

<mosaic_0001>
module attributes {stable_mosaic.version = 11 : i64} {
  func.func @dwconv_kernel(%arg0: i32, %arg1: i32, %arg2: i32, %arg3: memref<1x4x16x128xf32, #tpu.memory_space<vmem>>, %arg4: memref<1x1x16x128xf32, #tpu.memory_space<vmem>>, %arg5: memref<1x1x16x128xf32, #tpu.memory_space<vmem>>, %arg6: memref<3x3x128xf32, #tpu.memory_space<vmem>>, %arg7: memref<1x128xf32, #tpu.memory_space<vmem>>, %arg8: memref<1x4x16x128xf32, #tpu.memory_space<vmem>>) attributes {dimension_semantics = [#tpu.dimension_semantics<parallel>, #tpu.dimension_semantics<parallel>, #tpu.dimension_semantics<parallel>], iteration_bounds = array<i64: 2, 4, 2>, scalar_prefetch = 0 : i64, scratch_operands = 0 : i64, tpu.core_type = #tpu.core_type<tc>, window_params = [{transform_indices = @transform_0, window_bounds = array<i64: 1, 4, 16, 128>}, {transform_indices = @transform_1, window_bounds = array<i64: 1, 1, 16, 128>}, {transform_indices = @transform_2, window_bounds = array<i64: 1, 1, 16, 128>}, {transform_indices = @transform_3, window_bounds = array<i64: 3, 3, 128>}, {transform_indices = @transform_4, window_bounds = array<i64: 1, 128>}, {transform_indices = @transform_5, window_bounds = array<i64: 1, 4, 16, 128>}]} {
    %c0 = arith.constant 0 : index
    %c0_0 = arith.constant 0 : index
    %c0_1 = arith.constant 0 : index
    %c0_2 = arith.constant 0 : index
    %0 = vector.load %arg4[%c0, %c0_0, %c0_1, %c0_2] : memref<1x1x16x128xf32, #tpu.memory_space<vmem>>, vector<1x1x16x128xf32>
    %1 = vector.shape_cast %0 : vector<1x1x16x128xf32> to vector<1x16x128xf32>
    %c0_i32 = arith.constant 0 : i32
    %2 = arith.cmpi sgt, %arg1, %c0_i32 : i32
    %3 = arith.extui %2 : i1 to i32
    %4 = arith.sitofp %3 : i32 to f32
    %5 = vector.broadcast %4 : f32 to vector<1x16x128xf32>
    %6 = arith.mulf %1, %5 : vector<1x16x128xf32>
    %c0_3 = arith.constant 0 : index
    %c0_4 = arith.constant 0 : index
    %c0_5 = arith.constant 0 : index
    %c0_6 = arith.constant 0 : index
    %7 = vector.load %arg5[%c0_3, %c0_4, %c0_5, %c0_6] : memref<1x1x16x128xf32, #tpu.memory_space<vmem>>, vector<1x1x16x128xf32>
    %8 = vector.shape_cast %7 : vector<1x1x16x128xf32> to vector<1x16x128xf32>
    %c3_i32 = arith.constant 3 : i32
    %9 = arith.cmpi slt, %arg1, %c3_i32 : i32
    %10 = arith.extui %9 : i1 to i32
    %11 = arith.sitofp %10 : i32 to f32
    %12 = vector.broadcast %11 : f32 to vector<1x16x128xf32>
    %13 = arith.mulf %8, %12 : vector<1x16x128xf32>
    %c0_7 = arith.constant 0 : index
    %c0_8 = arith.constant 0 : index
    %c0_9 = arith.constant 0 : index
    %c0_10 = arith.constant 0 : index
    %14 = vector.load %arg3[%c0_7, %c0_8, %c0_9, %c0_10] : memref<1x4x16x128xf32, #tpu.memory_space<vmem>>, vector<1x4x16x128xf32>
    %15 = vector.shape_cast %14 : vector<1x4x16x128xf32> to vector<4x16x128xf32>
    %16 = tpu.iota {dimensions = array<i32: 1>} : vector<1x16x1xi32>
    %c1_i32 = arith.constant 1 : i32
    %17 = vector.broadcast %c1_i32 : i32 to vector<1x16x1xi32>
    %18 = arith.cmpi sge, %16, %17 : vector<1x16x1xi32>
    %19 = arith.extui %18 : vector<1x16x1xi1> to vector<1x16x1xi32>
    %20 = arith.sitofp %19 : vector<1x16x1xi32> to vector<1x16x1xf32>
    %c14_i32 = arith.constant 14 : i32
    %21 = vector.broadcast %c14_i32 : i32 to vector<1x16x1xi32>
    %22 = arith.cmpi sle, %16, %21 : vector<1x16x1xi32>
    %23 = arith.extui %22 : vector<1x16x1xi1> to vector<1x16x1xi32>
    %24 = arith.sitofp %23 : vector<1x16x1xi32> to vector<1x16x1xf32>
    %c1_i32_11 = arith.constant 1 : i32
    %25 = tpu.dynamic_rotate %15 by %c1_i32_11 dim 1 : vector<4x16x128xf32>, i32 -> vector<4x16x128xf32>
    %26 = vector.broadcast %20 : vector<1x16x1xf32> to vector<4x16x128xf32>
    %27 = arith.mulf %25, %26 : vector<4x16x128xf32>
    %c15_i32 = arith.constant 15 : i32
    %28 = tpu.dynamic_rotate %15 by %c15_i32 dim 1 : vector<4x16x128xf32>, i32 -> vector<4x16x128xf32>
    %29 = vector.broadcast %24 : vector<1x16x1xf32> to vector<4x16x128xf32>
    %30 = arith.mulf %28, %29 : vector<4x16x128xf32>
    %c1_i32_12 = arith.constant 1 : i32
    %31 = tpu.dynamic_rotate %6 by %c1_i32_12 dim 1 : vector<1x16x128xf32>, i32 -> vector<1x16x128xf32>
    %32 = vector.broadcast %20 : vector<1x16x1xf32> to vector<1x16x128xf32>
    %33 = arith.mulf %31, %32 : vector<1x16x128xf32>
    %c15_i32_13 = arith.constant 15 : i32
    %34 = tpu.dynamic_rotate %6 by %c15_i32_13 dim 1 : vector<1x16x128xf32>, i32 -> vector<1x16x128xf32>
    %35 = vector.broadcast %24 : vector<1x16x1xf32> to vector<1x16x128xf32>
    %36 = arith.mulf %34, %35 : vector<1x16x128xf32>
    %c1_i32_14 = arith.constant 1 : i32
    %37 = tpu.dynamic_rotate %13 by %c1_i32_14 dim 1 : vector<1x16x128xf32>, i32 -> vector<1x16x128xf32>
    %38 = vector.broadcast %20 : vector<1x16x1xf32> to vector<1x16x128xf32>
    %39 = arith.mulf %37, %38 : vector<1x16x128xf32>
    %c15_i32_15 = arith.constant 15 : i32
    %40 = tpu.dynamic_rotate %13 by %c15_i32_15 dim 1 : vector<1x16x128xf32>, i32 -> vector<1x16x128xf32>
    %41 = vector.broadcast %24 : vector<1x16x1xf32> to vector<1x16x128xf32>
    %42 = arith.mulf %40, %41 : vector<1x16x128xf32>
    %c0_16 = arith.constant 0 : index
    %c0_17 = arith.constant 0 : index
    %c0_18 = arith.constant 0 : index
    %43 = vector.load %arg6[%c0_16, %c0_17, %c0_18] : memref<3x3x128xf32, #tpu.memory_space<vmem>>, vector<3x3x128xf32>
    %c0_19 = arith.constant 0 : index
    %c0_20 = arith.constant 0 : index
    %44 = vector.load %arg7[%c0_19, %c0_20] : memref<1x128xf32, #tpu.memory_space<vmem>>, vector<1x128xf32>
    %45 = vector.shape_cast %44 : vector<1x128xf32> to vector<128xf32>
    %46 = vector.extract_strided_slice %43 {offsets = [0, 0, 0], sizes = [1, 1, 128], strides = [1, 1, 1]} : vector<3x3x128xf32> to vector<1x1x128xf32>
    %47 = vector.shape_cast %46 : vector<1x1x128xf32> to vector<128xf32>
    %48 = vector.shape_cast %47 : vector<128xf32> to vector<1x1x128xf32>
    %49 = vector.broadcast %48 : vector<1x1x128xf32> to vector<1x16x128xf32>
    %50 = arith.mulf %33, %49 : vector<1x16x128xf32>
    %51 = vector.extract_strided_slice %43 {offsets = [0, 1, 0], sizes = [1, 1, 128], strides = [1, 1, 1]} : vector<3x3x128xf32> to vector<1x1x128xf32>
    %52 = vector.shape_cast %51 : vector<1x1x128xf32> to vector<128xf32>
    %53 = vector.shape_cast %52 : vector<128xf32> to vector<1x1x128xf32>
    %54 = vector.broadcast %53 : vector<1x1x128xf32> to vector<1x16x128xf32>
    %55 = arith.mulf %6, %54 : vector<1x16x128xf32>
    %56 = arith.addf %50, %55 : vector<1x16x128xf32>
    %57 = vector.extract_strided_slice %43 {offsets = [0, 2, 0], sizes = [1, 1, 128], strides = [1, 1, 1]} : vector<3x3x128xf32> to vector<1x1x128xf32>
    %58 = vector.shape_cast %57 : vector<1x1x128xf32> to vector<128xf32>
    %59 = vector.shape_cast %58 : vector<128xf32> to vector<1x1x128xf32>
    %60 = vector.broadcast %59 : vector<1x1x128xf32> to vector<1x16x128xf32>
    %61 = arith.mulf %36, %60 : vector<1x16x128xf32>
    %62 = arith.addf %56, %61 : vector<1x16x128xf32>
    %63 = vector.shape_cast %45 : vector<128xf32> to vector<1x1x128xf32>
    %64 = vector.broadcast %63 : vector<1x1x128xf32> to vector<1x16x128xf32>
    %65 = arith.addf %64, %62 : vector<1x16x128xf32>
    %66 = vector.extract_strided_slice %27 {offsets = [0, 0, 0], sizes = [1, 16, 128], strides = [1, 1, 1]} : vector<4x16x128xf32> to vector<1x16x128xf32>
    %67 = vector.extract_strided_slice %15 {offsets = [0, 0, 0], sizes = [1, 16, 128], strides = [1, 1, 1]} : vector<4x16x128xf32> to vector<1x16x128xf32>
    %68 = vector.extract_strided_slice %30 {offsets = [0, 0, 0], sizes = [1, 16, 128], strides = [1, 1, 1]} : vector<4x16x128xf32> to vector<1x16x128xf32>
    %69 = vector.extract_strided_slice %43 {offsets = [1, 0, 0], sizes = [1, 1, 128], strides = [1, 1, 1]} : vector<3x3x128xf32> to vector<1x1x128xf32>
    %70 = vector.shape_cast %69 : vector<1x1x128xf32> to vector<128xf32>
    %71 = vector.shape_cast %70 : vector<128xf32> to vector<1x1x128xf32>
    %72 = vector.broadcast %71 : vector<1x1x128xf32> to vector<1x16x128xf32>
    %73 = arith.mulf %66, %72 : vector<1x16x128xf32>
    %74 = vector.extract_strided_slice %43 {offsets = [1, 1, 0], sizes = [1, 1, 128], strides = [1, 1, 1]} : vector<3x3x128xf32> to vector<1x1x128xf32>
    %75 = vector.shape_cast %74 : vector<1x1x128xf32> to vector<128xf32>
    %76 = vector.shape_cast %75 : vector<128xf32> to vector<1x1x128xf32>
    %77 = vector.broadcast %76 : vector<1x1x128xf32> to vector<1x16x128xf32>
    %78 = arith.mulf %67, %77 : vector<1x16x128xf32>
    %79 = arith.addf %73, %78 : vector<1x16x128xf32>
    %80 = vector.extract_strided_slice %43 {offsets = [1, 2, 0], sizes = [1, 1, 128], strides = [1, 1, 1]} : vector<3x3x128xf32> to vector<1x1x128xf32>
    %81 = vector.shape_cast %80 : vector<1x1x128xf32> to vector<128xf32>
    %82 = vector.shape_cast %81 : vector<128xf32> to vector<1x1x128xf32>
    %83 = vector.broadcast %82 : vector<1x1x128xf32> to vector<1x16x128xf32>
    %84 = arith.mulf %68, %83 : vector<1x16x128xf32>
    %85 = arith.addf %79, %84 : vector<1x16x128xf32>
    %86 = arith.addf %65, %85 : vector<1x16x128xf32>
    %87 = vector.extract_strided_slice %27 {offsets = [1, 0, 0], sizes = [1, 16, 128], strides = [1, 1, 1]} : vector<4x16x128xf32> to vector<1x16x128xf32>
    %88 = vector.extract_strided_slice %15 {offsets = [1, 0, 0], sizes = [1, 16, 128], strides = [1, 1, 1]} : vector<4x16x128xf32> to vector<1x16x128xf32>
    %89 = vector.extract_strided_slice %30 {offsets = [1, 0, 0], sizes = [1, 16, 128], strides = [1, 1, 1]} : vector<4x16x128xf32> to vector<1x16x128xf32>
    %90 = vector.extract_strided_slice %43 {offsets = [2, 0, 0], sizes = [1, 1, 128], strides = [1, 1, 1]} : vector<3x3x128xf32> to vector<1x1x128xf32>
    %91 = vector.shape_cast %90 : vector<1x1x128xf32> to vector<128xf32>
    %92 = vector.shape_cast %91 : vector<128xf32> to vector<1x1x128xf32>
    %93 = vector.broadcast %92 : vector<1x1x128xf32> to vector<1x16x128xf32>
    %94 = arith.mulf %87, %93 : vector<1x16x128xf32>
    %95 = vector.extract_strided_slice %43 {offsets = [2, 1, 0], sizes = [1, 1, 128], strides = [1, 1, 1]} : vector<3x3x128xf32> to vector<1x1x128xf32>
    %96 = vector.shape_cast %95 : vector<1x1x128xf32> to vector<128xf32>
    %97 = vector.shape_cast %96 : vector<128xf32> to vector<1x1x128xf32>
    %98 = vector.broadcast %97 : vector<1x1x128xf32> to vector<1x16x128xf32>
    %99 = arith.mulf %88, %98 : vector<1x16x128xf32>
    %100 = arith.addf %94, %99 : vector<1x16x128xf32>
    %101 = vector.extract_strided_slice %43 {offsets = [2, 2, 0], sizes = [1, 1, 128], strides = [1, 1, 1]} : vector<3x3x128xf32> to vector<1x1x128xf32>
    %102 = vector.shape_cast %101 : vector<1x1x128xf32> to vector<128xf32>
    %103 = vector.shape_cast %102 : vector<128xf32> to vector<1x1x128xf32>
    %104 = vector.broadcast %103 : vector<1x1x128xf32> to vector<1x16x128xf32>
    %105 = arith.mulf %89, %104 : vector<1x16x128xf32>
    %106 = arith.addf %100, %105 : vector<1x16x128xf32>
    %107 = arith.addf %86, %106 : vector<1x16x128xf32>
    %c0_21 = arith.constant 0 : index
    %c0_22 = arith.constant 0 : index
    %c0_23 = arith.constant 0 : index
    %c0_24 = arith.constant 0 : index
    %108 = vector.load %arg8[%c0_21, %c0_22, %c0_23, %c0_24] : memref<1x4x16x128xf32, #tpu.memory_space<vmem>>, vector<1x1x16x128xf32>
    %109 = vector.shape_cast %108 : vector<1x1x16x128xf32> to vector<1x16x128xf32>
    %110 = vector.shape_cast %107 : vector<1x16x128xf32> to vector<1x1x16x128xf32>
    tpu.vector_store %arg8[%c0_21, %c0_22, %c0_23, %c0_24], %110 {strides = array<i32>} : memref<1x4x16x128xf32, #tpu.memory_space<vmem>>, vector<1x1x16x128xf32>,
    %111 = vector.extract_strided_slice %27 {offsets = [0, 0, 0], sizes = [2, 16, 128], strides = [1, 1, 1]} : vector<4x16x128xf32> to vector<2x16x128xf32>
    %112 = vector.extract_strided_slice %15 {offsets = [0, 0, 0], sizes = [2, 16, 128], strides = [1, 1, 1]} : vector<4x16x128xf32> to vector<2x16x128xf32>
    %113 = vector.extract_strided_slice %30 {offsets = [0, 0, 0], sizes = [2, 16, 128], strides = [1, 1, 1]} : vector<4x16x128xf32> to vector<2x16x128xf32>
    %114 = vector.extract_strided_slice %43 {offsets = [0, 0, 0], sizes = [1, 1, 128], strides = [1, 1, 1]} : vector<3x3x128xf32> to vector<1x1x128xf32>
    %115 = vector.shape_cast %114 : vector<1x1x128xf32> to vector<128xf32>
    %116 = vector.shape_cast %115 : vector<128xf32> to vector<1x1x128xf32>
    %117 = vector.broadcast %116 : vector<1x1x128xf32> to vector<2x16x128xf32>
    %118 = arith.mulf %111, %117 : vector<2x16x128xf32>
    %119 = vector.extract_strided_slice %43 {offsets = [0, 1, 0], sizes = [1, 1, 128], strides = [1, 1, 1]} : vector<3x3x128xf32> to vector<1x1x128xf32>
    %120 = vector.shape_cast %119 : vector<1x1x128xf32> to vector<128xf32>
    %121 = vector.shape_cast %120 : vector<128xf32> to vector<1x1x128xf32>
    %122 = vector.broadcast %121 : vector<1x1x128xf32> to vector<2x16x128xf32>
    %123 = arith.mulf %112, %122 : vector<2x16x128xf32>
    %124 = arith.addf %118, %123 : vector<2x16x128xf32>
    %125 = vector.extract_strided_slice %43 {offsets = [0, 2, 0], sizes = [1, 1, 128], strides = [1, 1, 1]} : vector<3x3x128xf32> to vector<1x1x128xf32>
    %126 = vector.shape_cast %125 : vector<1x1x128xf32> to vector<128xf32>
    %127 = vector.shape_cast %126 : vector<128xf32> to vector<1x1x128xf32>
    %128 = vector.broadcast %127 : vector<1x1x128xf32> to vector<2x16x128xf32>
    %129 = arith.mulf %113, %128 : vector<2x16x128xf32>
    %130 = arith.addf %124, %129 : vector<2x16x128xf32>
    %131 = vector.shape_cast %45 : vector<128xf32> to vector<1x1x128xf32>
    %132 = vector.broadcast %131 : vector<1x1x128xf32> to vector<2x16x128xf32>
    %133 = arith.addf %132, %130 : vector<2x16x128xf32>
    %134 = vector.extract_strided_slice %27 {offsets = [1, 0, 0], sizes = [2, 16, 128], strides = [1, 1, 1]} : vector<4x16x128xf32> to vector<2x16x128xf32>
    %135 = vector.extract_strided_slice %15 {offsets = [1, 0, 0], sizes = [2, 16, 128], strides = [1, 1, 1]} : vector<4x16x128xf32> to vector<2x16x128xf32>
    %136 = vector.extract_strided_slice %30 {offsets = [1, 0, 0], sizes = [2, 16, 128], strides = [1, 1, 1]} : vector<4x16x128xf32> to vector<2x16x128xf32>
    %137 = vector.extract_strided_slice %43 {offsets = [1, 0, 0], sizes = [1, 1, 128], strides = [1, 1, 1]} : vector<3x3x128xf32> to vector<1x1x128xf32>
    %138 = vector.shape_cast %137 : vector<1x1x128xf32> to vector<128xf32>
    %139 = vector.shape_cast %138 : vector<128xf32> to vector<1x1x128xf32>
    %140 = vector.broadcast %139 : vector<1x1x128xf32> to vector<2x16x128xf32>
    %141 = arith.mulf %134, %140 : vector<2x16x128xf32>
    %142 = vector.extract_strided_slice %43 {offsets = [1, 1, 0], sizes = [1, 1, 128], strides = [1, 1, 1]} : vector<3x3x128xf32> to vector<1x1x128xf32>
    %143 = vector.shape_cast %142 : vector<1x1x128xf32> to vector<128xf32>
    %144 = vector.shape_cast %143 : vector<128xf32> to vector<1x1x128xf32>
    %145 = vector.broadcast %144 : vector<1x1x128xf32> to vector<2x16x128xf32>
    %146 = arith.mulf %135, %145 : vector<2x16x128xf32>
    %147 = arith.addf %141, %146 : vector<2x16x128xf32>
    %148 = vector.extract_strided_slice %43 {offsets = [1, 2, 0], sizes = [1, 1, 128], strides = [1, 1, 1]} : vector<3x3x128xf32> to vector<1x1x128xf32>
    %149 = vector.shape_cast %148 : vector<1x1x128xf32> to vector<128xf32>
    %150 = vector.shape_cast %149 : vector<128xf32> to vector<1x1x128xf32>
    %151 = vector.broadcast %150 : vector<1x1x128xf32> to vector<2x16x128xf32>
    %152 = arith.mulf %136, %151 : vector<2x16x128xf32>
    %153 = arith.addf %147, %152 : vector<2x16x128xf32>
    %154 = arith.addf %133, %153 : vector<2x16x128xf32>
    %155 = vector.extract_strided_slice %27 {offsets = [2, 0, 0], sizes = [2, 16, 128], strides = [1, 1, 1]} : vector<4x16x128xf32> to vector<2x16x128xf32>
    %156 = vector.extract_strided_slice %15 {offsets = [2, 0, 0], sizes = [2, 16, 128], strides = [1, 1, 1]} : vector<4x16x128xf32> to vector<2x16x128xf32>
    %157 = vector.extract_strided_slice %30 {offsets = [2, 0, 0], sizes = [2, 16, 128], strides = [1, 1, 1]} : vector<4x16x128xf32> to vector<2x16x128xf32>
    %158 = vector.extract_strided_slice %43 {offsets = [2, 0, 0], sizes = [1, 1, 128], strides = [1, 1, 1]} : vector<3x3x128xf32> to vector<1x1x128xf32>
    %159 = vector.shape_cast %158 : vector<1x1x128xf32> to vector<128xf32>
    %160 = vector.shape_cast %159 : vector<128xf32> to vector<1x1x128xf32>
    %161 = vector.broadcast %160 : vector<1x1x128xf32> to vector<2x16x128xf32>
    %162 = arith.mulf %155, %161 : vector<2x16x128xf32>
    %163 = vector.extract_strided_slice %43 {offsets = [2, 1, 0], sizes = [1, 1, 128], strides = [1, 1, 1]} : vector<3x3x128xf32> to vector<1x1x128xf32>
    %164 = vector.shape_cast %163 : vector<1x1x128xf32> to vector<128xf32>
    %165 = vector.shape_cast %164 : vector<128xf32> to vector<1x1x128xf32>
    %166 = vector.broadcast %165 : vector<1x1x128xf32> to vector<2x16x128xf32>
    %167 = arith.mulf %156, %166 : vector<2x16x128xf32>
    %168 = arith.addf %162, %167 : vector<2x16x128xf32>
    %169 = vector.extract_strided_slice %43 {offsets = [2, 2, 0], sizes = [1, 1, 128], strides = [1, 1, 1]} : vector<3x3x128xf32> to vector<1x1x128xf32>
    %170 = vector.shape_cast %169 : vector<1x1x128xf32> to vector<128xf32>
    %171 = vector.shape_cast %170 : vector<128xf32> to vector<1x1x128xf32>
    %172 = vector.broadcast %171 : vector<1x1x128xf32> to vector<2x16x128xf32>
    %173 = arith.mulf %157, %172 : vector<2x16x128xf32>
    %174 = arith.addf %168, %173 : vector<2x16x128xf32>
    %175 = arith.addf %154, %174 : vector<2x16x128xf32>
    %c0_25 = arith.constant 0 : index
    %c1 = arith.constant 1 : index
    %c0_26 = arith.constant 0 : index
    %c0_27 = arith.constant 0 : index
    %176 = vector.load %arg8[%c0_25, %c1, %c0_26, %c0_27] : memref<1x4x16x128xf32, #tpu.memory_space<vmem>>, vector<1x2x16x128xf32>
    %177 = vector.shape_cast %176 : vector<1x2x16x128xf32> to vector<2x16x128xf32>
    %178 = vector.shape_cast %175 : vector<2x16x128xf32> to vector<1x2x16x128xf32>
    tpu.vector_store %arg8[%c0_25, %c1, %c0_26, %c0_27], %178 {strides = array<i32>} : memref<1x4x16x128xf32, #tpu.memory_space<vmem>>, vector<1x2x16x128xf32>,
    %179 = vector.extract_strided_slice %27 {offsets = [2, 0, 0], sizes = [1, 16, 128], strides = [1, 1, 1]} : vector<4x16x128xf32> to vector<1x16x128xf32>
    %180 = vector.extract_strided_slice %15 {offsets = [2, 0, 0], sizes = [1, 16, 128], strides = [1, 1, 1]} : vector<4x16x128xf32> to vector<1x16x128xf32>
    %181 = vector.extract_strided_slice %30 {offsets = [2, 0, 0], sizes = [1, 16, 128], strides = [1, 1, 1]} : vector<4x16x128xf32> to vector<1x16x128xf32>
    %182 = vector.extract_strided_slice %43 {offsets = [0, 0, 0], sizes = [1, 1, 128], strides = [1, 1, 1]} : vector<3x3x128xf32> to vector<1x1x128xf32>
    %183 = vector.shape_cast %182 : vector<1x1x128xf32> to vector<128xf32>
    %184 = vector.shape_cast %183 : vector<128xf32> to vector<1x1x128xf32>
    %185 = vector.broadcast %184 : vector<1x1x128xf32> to vector<1x16x128xf32>
    %186 = arith.mulf %179, %185 : vector<1x16x128xf32>
    %187 = vector.extract_strided_slice %43 {offsets = [0, 1, 0], sizes = [1, 1, 128], strides = [1, 1, 1]} : vector<3x3x128xf32> to vector<1x1x128xf32>
    %188 = vector.shape_cast %187 : vector<1x1x128xf32> to vector<128xf32>
    %189 = vector.shape_cast %188 : vector<128xf32> to vector<1x1x128xf32>
    %190 = vector.broadcast %189 : vector<1x1x128xf32> to vector<1x16x128xf32>
    %191 = arith.mulf %180, %190 : vector<1x16x128xf32>
    %192 = arith.addf %186, %191 : vector<1x16x128xf32>
    %193 = vector.extract_strided_slice %43 {offsets = [0, 2, 0], sizes = [1, 1, 128], strides = [1, 1, 1]} : vector<3x3x128xf32> to vector<1x1x128xf32>
    %194 = vector.shape_cast %193 : vector<1x1x128xf32> to vector<128xf32>
    %195 = vector.shape_cast %194 : vector<128xf32> to vector<1x1x128xf32>
    %196 = vector.broadcast %195 : vector<1x1x128xf32> to vector<1x16x128xf32>
    %197 = arith.mulf %181, %196 : vector<1x16x128xf32>
    %198 = arith.addf %192, %197 : vector<1x16x128xf32>
    %199 = vector.shape_cast %45 : vector<128xf32> to vector<1x1x128xf32>
    %200 = vector.broadcast %199 : vector<1x1x128xf32> to vector<1x16x128xf32>
    %201 = arith.addf %200, %198 : vector<1x16x128xf32>
    %202 = vector.extract_strided_slice %27 {offsets = [3, 0, 0], sizes = [1, 16, 128], strides = [1, 1, 1]} : vector<4x16x128xf32> to vector<1x16x128xf32>
    %203 = vector.extract_strided_slice %15 {offsets = [3, 0, 0], sizes = [1, 16, 128], strides = [1, 1, 1]} : vector<4x16x128xf32> to vector<1x16x128xf32>
    %204 = vector.extract_strided_slice %30 {offsets = [3, 0, 0], sizes = [1, 16, 128], strides = [1, 1, 1]} : vector<4x16x128xf32> to vector<1x16x128xf32>
    %205 = vector.extract_strided_slice %43 {offsets = [1, 0, 0], sizes = [1, 1, 128], strides = [1, 1, 1]} : vector<3x3x128xf32> to vector<1x1x128xf32>
    %206 = vector.shape_cast %205 : vector<1x1x128xf32> to vector<128xf32>
    %207 = vector.shape_cast %206 : vector<128xf32> to vector<1x1x128xf32>
    %208 = vector.broadcast %207 : vector<1x1x128xf32> to vector<1x16x128xf32>
    %209 = arith.mulf %202, %208 : vector<1x16x128xf32>
    %210 = vector.extract_strided_slice %43 {offsets = [1, 1, 0], sizes = [1, 1, 128], strides = [1, 1, 1]} : vector<3x3x128xf32> to vector<1x1x128xf32>
    %211 = vector.shape_cast %210 : vector<1x1x128xf32> to vector<128xf32>
    %212 = vector.shape_cast %211 : vector<128xf32> to vector<1x1x128xf32>
    %213 = vector.broadcast %212 : vector<1x1x128xf32> to vector<1x16x128xf32>
    %214 = arith.mulf %203, %213 : vector<1x16x128xf32>
    %215 = arith.addf %209, %214 : vector<1x16x128xf32>
    %216 = vector.extract_strided_slice %43 {offsets = [1, 2, 0], sizes = [1, 1, 128], strides = [1, 1, 1]} : vector<3x3x128xf32> to vector<1x1x128xf32>
    %217 = vector.shape_cast %216 : vector<1x1x128xf32> to vector<128xf32>
    %218 = vector.shape_cast %217 : vector<128xf32> to vector<1x1x128xf32>
    %219 = vector.broadcast %218 : vector<1x1x128xf32> to vector<1x16x128xf32>
    %220 = arith.mulf %204, %219 : vector<1x16x128xf32>
    %221 = arith.addf %215, %220 : vector<1x16x128xf32>
    %222 = arith.addf %201, %221 : vector<1x16x128xf32>
    %223 = vector.extract_strided_slice %43 {offsets = [2, 0, 0], sizes = [1, 1, 128], strides = [1, 1, 1]} : vector<3x3x128xf32> to vector<1x1x128xf32>
    %224 = vector.shape_cast %223 : vector<1x1x128xf32> to vector<128xf32>
    %225 = vector.shape_cast %224 : vector<128xf32> to vector<1x1x128xf32>
    %226 = vector.broadcast %225 : vector<1x1x128xf32> to vector<1x16x128xf32>
    %227 = arith.mulf %39, %226 : vector<1x16x128xf32>
    %228 = vector.extract_strided_slice %43 {offsets = [2, 1, 0], sizes = [1, 1, 128], strides = [1, 1, 1]} : vector<3x3x128xf32> to vector<1x1x128xf32>
    %229 = vector.shape_cast %228 : vector<1x1x128xf32> to vector<128xf32>
    %230 = vector.shape_cast %229 : vector<128xf32> to vector<1x1x128xf32>
    %231 = vector.broadcast %230 : vector<1x1x128xf32> to vector<1x16x128xf32>
    %232 = arith.mulf %13, %231 : vector<1x16x128xf32>
    %233 = arith.addf %227, %232 : vector<1x16x128xf32>
    %234 = vector.extract_strided_slice %43 {offsets = [2, 2, 0], sizes = [1, 1, 128], strides = [1, 1, 1]} : vector<3x3x128xf32> to vector<1x1x128xf32>
    %235 = vector.shape_cast %234 : vector<1x1x128xf32> to vector<128xf32>
    %236 = vector.shape_cast %235 : vector<128xf32> to vector<1x1x128xf32>
    %237 = vector.broadcast %236 : vector<1x1x128xf32> to vector<1x16x128xf32>
    %238 = arith.mulf %42, %237 : vector<1x16x128xf32>
    %239 = arith.addf %233, %238 : vector<1x16x128xf32>
    %240 = arith.addf %222, %239 : vector<1x16x128xf32>
    %c0_28 = arith.constant 0 : index
    %c3 = arith.constant 3 : index
    %c0_29 = arith.constant 0 : index
    %c0_30 = arith.constant 0 : index
    %241 = vector.load %arg8[%c0_28, %c3, %c0_29, %c0_30] : memref<1x4x16x128xf32, #tpu.memory_space<vmem>>, vector<1x1x16x128xf32>
    %242 = vector.shape_cast %241 : vector<1x1x16x128xf32> to vector<1x16x128xf32>
    %243 = vector.shape_cast %240 : vector<1x16x128xf32> to vector<1x1x16x128xf32>
    tpu.vector_store %arg8[%c0_28, %c3, %c0_29, %c0_30], %243 {strides = array<i32>} : memref<1x4x16x128xf32, #tpu.memory_space<vmem>>, vector<1x1x16x128xf32>,
    return
  }
  func.func @transform_0(%arg0: i32, %arg1: i32, %arg2: i32) -> (i32, i32, i32, i32) {
    %c0_i32 = arith.constant 0 : i32
    %c0_i32_0 = arith.constant 0 : i32
    return %arg0, %arg1, %c0_i32, %arg2 : i32, i32, i32, i32
  }
  func.func @transform_1(%arg0: i32, %arg1: i32, %arg2: i32) -> (i32, i32, i32, i32) {
    %c4_i32 = arith.constant 4 : i32
    %0 = arith.muli %arg1, %c4_i32 : i32
    %c1_i32 = arith.constant 1 : i32
    %1 = arith.subi %0, %c1_i32 : i32
    %c0_i32 = arith.constant 0 : i32
    %2 = arith.maxsi %1, %c0_i32 : i32
    %c0_i32_0 = arith.constant 0 : i32
    %c0_i32_1 = arith.constant 0 : i32
    return %arg0, %2, %c0_i32_0, %arg2 : i32, i32, i32, i32
  }
  func.func @transform_2(%arg0: i32, %arg1: i32, %arg2: i32) -> (i32, i32, i32, i32) {
    %c4_i32 = arith.constant 4 : i32
    %0 = arith.muli %arg1, %c4_i32 : i32
    %c4_i32_0 = arith.constant 4 : i32
    %1 = arith.addi %0, %c4_i32_0 : i32
    %c15_i32 = arith.constant 15 : i32
    %2 = arith.minsi %1, %c15_i32 : i32
    %c0_i32 = arith.constant 0 : i32
    %c0_i32_1 = arith.constant 0 : i32
    return %arg0, %2, %c0_i32, %arg2 : i32, i32, i32, i32
  }
  func.func @transform_3(%arg0: i32, %arg1: i32, %arg2: i32) -> (i32, i32, i32) {
    %c0_i32 = arith.constant 0 : i32
    %c0_i32_0 = arith.constant 0 : i32
    %c0_i32_1 = arith.constant 0 : i32
    return %c0_i32, %c0_i32_0, %arg2 : i32, i32, i32
  }
  func.func @transform_4(%arg0: i32, %arg1: i32, %arg2: i32) -> (i32, i32) {
    %c0_i32 = arith.constant 0 : i32
    %c0_i32_0 = arith.constant 0 : i32
    return %c0_i32, %arg2 : i32, i32
  }
  func.func @transform_5(%arg0: i32, %arg1: i32, %arg2: i32) -> (i32, i32, i32, i32) {
    %c0_i32 = arith.constant 0 : i32
    %c0_i32_0 = arith.constant 0 : i32
    return %arg0, %arg1, %c0_i32, %arg2 : i32, i32, i32, i32
  }
}

</mosaic_0001>

<llo_original>
// kernel: tpu_custom_call.1
$region0: #{tpu_custom_call.1}
  #allocation0 [shape = 'u32[]', space=smem, size = 0x4, offset = 0x4, fixed_abs, tag = 'smem constant byte address 0x4 - core index']
  #allocation1 [shape = 'u32[144,128]{1,0:T(1,128)}', space=vmem, size = 0x12000, scoped, tag = 'internal scratch']
  %s0 = inlined_call_operand.hbm [shape: f32[2,16,16,256], index: 0, kind: input, shape index: {}]
  %s1 = inlined_call_operand.hbm [shape: f32[2,16,16,256], index: 1, kind: input, shape index: {}]
  %s2 = inlined_call_operand.hbm [shape: f32[2,16,16,256], index: 2, kind: input, shape index: {}]
  %s3 = inlined_call_operand.hbm [shape: f32[3,3,256], index: 3, kind: input, shape index: {}]
  %s4 = inlined_call_operand.vmem [shape: f32[1,256], index: 4, kind: input, shape index: {}]
  %s5 = inlined_call_operand.hbm [shape: f32[2,16,16,256], index: 5, kind: output, shape index: {}]
  %s6 = sld [smem:[#allocation0]]
  $region69: #{tpu_custom_call.1} parent=0
    _
  %s8 = ssub.s32 1, %s6
  %s9 = scalar_select 0, %s8, %s6
  $region1: #{tpu_custom_call.1} parent=0
    #allocation2 [shape = 'u8[65536]{0}', space=vmem, size = 0x10000, scoped, tag = 'input window, operand 0']
    #allocation3 [shape = 's32[2]{0}', space=sflag, size = 0x8, scoped, tag = 'scoped memory for tpu_custom_call.1']
    #allocation4 [shape = 's32[2]{0}', space=sflag, size = 0x8, scoped, tag = 'scoped memory for tpu_custom_call.1']
    #allocation5 [shape = 'u8[16384]{0}', space=vmem, size = 0x4000, scoped, tag = 'input window, operand 1']
    #allocation6 [shape = 's32[2]{0}', space=sflag, size = 0x8, scoped, tag = 'scoped memory for tpu_custom_call.1']
    #allocation7 [shape = 'u8[16384]{0}', space=vmem, size = 0x4000, scoped, tag = 'input window, operand 2']
    #allocation8 [shape = 'u8[12288]{0}', space=vmem, size = 0x3000, scoped, tag = 'input window, operand 3']
    #allocation9 [shape = 's32[2]{0}', space=sflag, size = 0x8, scoped, tag = 'scoped memory for tpu_custom_call.1']
    #allocation10 [shape = 'u8[65536]{0}', space=vmem, size = 0x10000, scoped, tag = 'output window, operand 0']
    %10 = vsyncpa [#allocation3], 0
    %s11 = scalar_lea.sflag [#allocation3], 1
    %12 = vsyncpa %s11, 0
    %13 = vsyncpa [#allocation6], 0
    %s14 = scalar_lea.sflag [#allocation6], 1
    %15 = vsyncpa %s14, 0
    %16 = vsyncpa [#allocation9], 0
    %s17 = scalar_lea.sflag [#allocation9], 1
    %18 = vsyncpa %s17, 0
    %19 = vsyncpa [#allocation4], 0
    %s20 = scalar_lea.sflag [#allocation4], 1
    %21 = vsyncpa %s20, 0
    loop: start=0, step=1, limit=18
    $region2: #{tpu_custom_call.1} parent=1 // loop_pre_header
      _
    $region3: #{tpu_custom_call.1} parent=1 // loop_header
      %s23 = sphi 0, %s27
      %p24 = scmp.ge.s32.totalorder %s23, 18
      %s30 = sphi 0, %s49
      %s31 = sphi 0, %s45
      %s32 = sphi 0, %s41
      %s33 = sphi 0, %s30
      %s34 = sphi 0, %s31
      %s35 = sphi 0, %s32
      %s36 = sphi 0, %s33
      %s37 = sphi 0, %s34
      %s38 = sphi 0, %s35
      %s56 = sphi 0, %s58
      %s59 = sphi 0, %s56
      %s60 = sphi 0, %s59
      %s76 = sphi 0, %s60
      %s94 = sphi 0, %s96
      %s97 = sphi 0, %s94
      %s98 = sphi 0, %s97
      %s114 = sphi 0, %s98
      %s132 = sphi 0, %s134
      %s135 = sphi 0, %s132
      %s136 = sphi 0, %s135
      %s152 = sphi 0, %s136
      %s158 = sphi 0, %s160
      %s161 = sphi 0, %s158
      %s162 = sphi 0, %s161
      %s178 = sphi 0, %s162
      %s184 = sphi 0, %s186
      %s187 = sphi 0, %s184
      %s188 = sphi 0, %s187
      %s204 = sphi 0, %s188
      %s214 = sphi 0, %s216
      %s217 = sphi 0, %s214
      %s218 = sphi 0, %s217
      %s234 = sphi 0, %s218
    $region4: #{tpu_custom_call.1} parent=1 // loop_header_branch
      %26 = sbr.rel (%p24) target = $region8
    $region5: #{tpu_custom_call.1} parent=1 // loop_body
      %s28 = ssub.s32 %s23, 1
      %s29 = ssub.s32 %s23, 2
      %s39 = sadd.s32 1, %s32
      %p40 = scmp.ge.s32.totalorder %s39, 2
      %s41 = scalar_select %p40, 0, %s39
      %s42 = sadd.s32 1, %s31
      %s43 = scalar_select %p40, %s42, %s31
      %p44 = scmp.ge.s32.totalorder %s43, 4
      %s45 = scalar_select %p44, 0, %s43
      %s46 = sadd.s32 1, %s30
      %s47 = scalar_select %p44, %s46, %s30
      %p48 = scmp.ge.s32.totalorder %s47, 2
      %s49 = scalar_select %p48, 0, %s47
      %s50 = ssub.s32 %s30, %s49
      %s51 = ssub.s32 %s31, %s45
      %s52 = sor.u32 %s50, %s51
      %s53 = ssub.s32 %s32, %s41
      %s54 = sor.u32 %s52, %s53
      %p55 = scmp.eq.s32.totalorder %s54, 0
      %s57 = sadd.s32 %s56, 1
      %s58 = scalar_select %p55, %s56, %s57
      %p61 = pneg %p55
      %p62 = scmp.eq.s32.totalorder %s23, 15
      %p63 = por %p61, %p62
      %p64 = scmp.ne.s32.totalorder %s56, %s59
      %p65 = scmp.eq.s32.totalorder %s23, 0
      %p66 = por %p64, %p65
      %p67 = scmp.ne.s32.totalorder %s56, %s59
      %p68 = scmp.eq.s32.totalorder %s28, 15
      %p69 = por %p67, %p68
      %p70 = scmp.ne.s32.totalorder %s59, %s60
      %p71 = scmp.eq.s32.totalorder %s28, 0
      %p72 = por %p70, %p71
      %p73 = scmp.ne.s32.totalorder %s59, %s60
      %p74 = scmp.eq.s32.totalorder %s29, 15
      %p75 = por %p73, %p74
      %p77 = scmp.ne.s32.totalorder %s60, %s76
      %p78 = scmp.eq.s32.totalorder %s29, 0
      %p79 = por %p77, %p78
      %s80 = smul.u32 %s31, 4
      %s81 = ssub.s32 %s80, 1
      %p82 = scmp.gt.s32.totalorder %s81, 0
      %s83 = scalar_select %p82, %s81, 0
      %s84 = smul.u32 %s45, 4
      %s85 = ssub.s32 %s84, 1
      %p86 = scmp.gt.s32.totalorder %s85, 0
      %s87 = scalar_select %p86, %s85, 0
      %s88 = ssub.s32 %s30, %s49
      %s89 = ssub.s32 %s83, %s87
      %s90 = sor.u32 %s88, %s89
      %s91 = ssub.s32 %s32, %s41
      %s92 = sor.u32 %s90, %s91
      %p93 = scmp.eq.s32.totalorder %s92, 0
      %s95 = sadd.s32 %s94, 1
      %s96 = scalar_select %p93, %s94, %s95
      %p99 = pneg %p93
      %p100 = scmp.eq.s32.totalorder %s23, 15
      %p101 = por %p99, %p100
      %p102 = scmp.ne.s32.totalorder %s94, %s97
      %p103 = scmp.eq.s32.totalorder %s23, 0
      %p104 = por %p102, %p103
      %p105 = scmp.ne.s32.totalorder %s94, %s97
      %p106 = scmp.eq.s32.totalorder %s28, 15
      %p107 = por %p105, %p106
      %p108 = scmp.ne.s32.totalorder %s97, %s98
      %p109 = scmp.eq.s32.totalorder %s28, 0
      %p110 = por %p108, %p109
      %p111 = scmp.ne.s32.totalorder %s97, %s98
      %p112 = scmp.eq.s32.totalorder %s29, 15
      %p113 = por %p111, %p112
      %p115 = scmp.ne.s32.totalorder %s98, %s114
      %p116 = scmp.eq.s32.totalorder %s29, 0
      %p117 = por %p115, %p116
      %s118 = smul.u32 %s31, 4
      %s119 = sadd.s32 %s118, 4
      %p120 = scmp.lt.s32.totalorder %s119, 15
      %s121 = scalar_select %p120, %s119, 15
      %s122 = smul.u32 %s45, 4
      %s123 = sadd.s32 %s122, 4
      %p124 = scmp.lt.s32.totalorder %s123, 15
      %s125 = scalar_select %p124, %s123, 15
      %s126 = ssub.s32 %s30, %s49
      %s127 = ssub.s32 %s121, %s125
      %s128 = sor.u32 %s126, %s127
      %s129 = ssub.s32 %s32, %s41
      %s130 = sor.u32 %s128, %s129
      %p131 = scmp.eq.s32.totalorder %s130, 0
      %s133 = sadd.s32 %s132, 1
      %s134 = scalar_select %p131, %s132, %s133
      %p137 = pneg %p131
      %p138 = scmp.eq.s32.totalorder %s23, 15
      %p139 = por %p137, %p138
      %p140 = scmp.ne.s32.totalorder %s132, %s135
      %p141 = scmp.eq.s32.totalorder %s23, 0
      %p142 = por %p140, %p141
      %p143 = scmp.ne.s32.totalorder %s132, %s135
      %p144 = scmp.eq.s32.totalorder %s28, 15
      %p145 = por %p143, %p144
      %p146 = scmp.ne.s32.totalorder %s135, %s136
      %p147 = scmp.eq.s32.totalorder %s28, 0
      %p148 = por %p146, %p147
      %p149 = scmp.ne.s32.totalorder %s135, %s136
      %p150 = scmp.eq.s32.totalorder %s29, 15
      %p151 = por %p149, %p150
      %p153 = scmp.ne.s32.totalorder %s136, %s152
      %p154 = scmp.eq.s32.totalorder %s29, 0
      %p155 = por %p153, %p154
      %s156 = ssub.s32 %s32, %s41
      %p157 = scmp.eq.s32.totalorder %s156, 0
      %s159 = sadd.s32 %s158, 1
      %s160 = scalar_select %p157, %s158, %s159
      %p163 = pneg %p157
      %p164 = scmp.eq.s32.totalorder %s23, 15
      %p165 = por %p163, %p164
      %p166 = scmp.ne.s32.totalorder %s158, %s161
      %p167 = scmp.eq.s32.totalorder %s23, 0
      %p168 = por %p166, %p167
      %p169 = scmp.ne.s32.totalorder %s158, %s161
      %p170 = scmp.eq.s32.totalorder %s28, 15
      %p171 = por %p169, %p170
      %p172 = scmp.ne.s32.totalorder %s161, %s162
      %p173 = scmp.eq.s32.totalorder %s28, 0
      %p174 = por %p172, %p173
      %p175 = scmp.ne.s32.totalorder %s161, %s162
      %p176 = scmp.eq.s32.totalorder %s29, 15
      %p177 = por %p175, %p176
      %p179 = scmp.ne.s32.totalorder %s162, %s178
      %p180 = scmp.eq.s32.totalorder %s29, 0
      %p181 = por %p179, %p180
      %s182 = ssub.s32 %s32, %s41
      %p183 = scmp.eq.s32.totalorder %s182, 0
      %s185 = sadd.s32 %s184, 1
      %s186 = scalar_select %p183, %s184, %s185
      %p189 = pneg %p183
      %p190 = scmp.eq.s32.totalorder %s23, 15
      %p191 = por %p189, %p190
      %p192 = scmp.ne.s32.totalorder %s184, %s187
      %p193 = scmp.eq.s32.totalorder %s23, 0
      %p194 = por %p192, %p193
      %p195 = scmp.ne.s32.totalorder %s184, %s187
      %p196 = scmp.eq.s32.totalorder %s28, 15
      %p197 = por %p195, %p196
      %p198 = scmp.ne.s32.totalorder %s187, %s188
      %p199 = scmp.eq.s32.totalorder %s28, 0
      %p200 = por %p198, %p199
      %p201 = scmp.ne.s32.totalorder %s187, %s188
      %p202 = scmp.eq.s32.totalorder %s29, 15
      %p203 = por %p201, %p202
      %p205 = scmp.ne.s32.totalorder %s188, %s204
      %p206 = scmp.eq.s32.totalorder %s29, 0
      %p207 = por %p205, %p206
      %s208 = ssub.s32 %s30, %s49
      %s209 = ssub.s32 %s31, %s45
      %s210 = sor.u32 %s208, %s209
      %s211 = ssub.s32 %s32, %s41
      %s212 = sor.u32 %s210, %s211
      %p213 = scmp.eq.s32.totalorder %s212, 0
      %s215 = sadd.s32 %s214, 1
      %s216 = scalar_select %p213, %s214, %s215
      %p219 = pneg %p213
      %p220 = scmp.eq.s32.totalorder %s23, 15
      %p221 = por %p219, %p220
      %p222 = scmp.ne.s32.totalorder %s214, %s217
      %p223 = scmp.eq.s32.totalorder %s23, 0
      %p224 = por %p222, %p223
      %p225 = scmp.ne.s32.totalorder %s214, %s217
      %p226 = scmp.eq.s32.totalorder %s28, 15
      %p227 = por %p225, %p226
      %p228 = scmp.ne.s32.totalorder %s217, %s218
      %p229 = scmp.eq.s32.totalorder %s28, 0
      %p230 = por %p228, %p229
      %p231 = scmp.ne.s32.totalorder %s217, %s218
      %p232 = scmp.eq.s32.totalorder %s29, 15
      %p233 = por %p231, %p232
      %p235 = scmp.ne.s32.totalorder %s218, %s234
      %p236 = scmp.eq.s32.totalorder %s29, 0
      %p237 = por %p235, %p236
      %p238 = scmp.le.s32.totalorder 1, %s23
      %p239 = scmp.lt.s32.totalorder %s23, 17
      %p240 = pnand %p238, %p239
      %p241 = pneg %p240
      // Predicated region
      $region9: #{tpu_custom_call.1} parent=5 // pred_check
        _
      $region10: #{tpu_custom_call.1} parent=5 // pred_check_branch
        %243 = sbr.rel (%p240) target = $region12
      $region11: #{tpu_custom_call.1} parent=5 // pred_region
        %s244 = ssub.s32 %s23, 1
      $region12: #{tpu_custom_call.1} parent=5 // pred_fallthru
        _
      %p245 = scmp.lt.s32.totalorder %s23, 16
      // Predicated region
      $region13: #{tpu_custom_call.1} parent=5 // pred_check
        %p246 = pneg %p245
      $region14: #{tpu_custom_call.1} parent=5 // pred_check_branch
        %248 = sbr.rel (%p246) target = $region16
      $region15: #{tpu_custom_call.1} parent=5 // pred_region
        // Predicated region
        $region17: #{tpu_custom_call.1} parent=15 // pred_check
          %p249 = pneg %p66
        $region18: #{tpu_custom_call.1} parent=15 // pred_check_branch
          %251 = sbr.rel (%p249) target = $region20
        $region19: #{tpu_custom_call.1} parent=15 // pred_region
          %s252 = sand.u32 %s56, 1
          %s253 = scalar_lea.sflag [#allocation3], %s252
          %s254 = sand.u32 %s56, 1
          %s255 = smul.addr %s254, 64
          %s256 = scalar_lea.vmem [#allocation2], %s255
          %s257 = smul.u32 4, %s31
          %s259 = ssub.s32 1024, 1024
          %260 = vsyncadd %s253, %s259
          %s261 = smul.addr %s257, 4
          %s262 = sadd.s32 %s32, %s261
          %s263 = smul.addr %s30, 64
          %s264 = sadd.s32 %s262, %s263
          %s265 = smul.addr %s264, 128
          %s266 = scalar_lea.hbm %s0, %s265
          %s267 = sshll.u32 %s256, 4
          %s268 = int_to_ptr.vmem [resolvable:$true] %s267
          %273 = dma.hbm_to_vmem [thread:$0]  %s266, 1024, %s268, %s253, 256, 128, 8
        $region20: #{tpu_custom_call.1} parent=15 // pred_fallthru
          _
        // Predicated region
        $region21: #{tpu_custom_call.1} parent=15 // pred_check
          %p274 = pneg %p104
        $region22: #{tpu_custom_call.1} parent=15 // pred_check_branch
          %276 = sbr.rel (%p274) target = $region24
        $region23: #{tpu_custom_call.1} parent=15 // pred_region
          %s277 = sand.u32 %s23, 1
          %s278 = scalar_lea.sflag [#allocation6], %s277
          %s279 = sand.u32 %s94, 1
          %s280 = smul.addr %s279, 16
          %s281 = scalar_lea.vmem [#allocation5], %s280
          %s282 = smul.u32 %s31, 4
          %s283 = ssub.s32 %s282, 1
          %p284 = scmp.gt.s32.totalorder %s283, 0
          %s285 = scalar_select %p284, %s283, 0
          %s287 = ssub.s32 256, 256
          %288 = vsyncadd %s278, %s287
          %s289 = smul.addr %s285, 4
          %s290 = sadd.s32 %s32, %s289
          %s291 = smul.addr %s30, 64
          %s292 = sadd.s32 %s290, %s291
          %s293 = smul.addr %s292, 128
          %s294 = scalar_lea.hbm %s1, %s293
          %s295 = sshll.u32 %s281, 4
          %s296 = int_to_ptr.vmem [resolvable:$true] %s295
          %301 = dma.hbm_to_vmem [thread:$0]  %s294, 256, %s296, %s278, 256, 128, 8
        $region24: #{tpu_custom_call.1} parent=15 // pred_fallthru
          _
        // Predicated region
        $region25: #{tpu_custom_call.1} parent=15 // pred_check
          %p302 = pneg %p142
        $region26: #{tpu_custom_call.1} parent=15 // pred_check_branch
          %304 = sbr.rel (%p302) target = $region28
        $region27: #{tpu_custom_call.1} parent=15 // pred_region
          %s305 = sand.u32 %s23, 1
          %s306 = scalar_lea.sflag [#allocation6], %s305
          %s307 = sand.u32 %s132, 1
          %s308 = smul.addr %s307, 16
          %s309 = scalar_lea.vmem [#allocation7], %s308
          %s310 = smul.u32 %s31, 4
          %s311 = sadd.s32 %s310, 4
          %p312 = scmp.lt.s32.totalorder %s311, 15
          %s313 = scalar_select %p312, %s311, 15
          %s315 = ssub.s32 256, 256
          %316 = vsyncadd %s306, %s315
          %s317 = smul.addr %s313, 4
          %s318 = sadd.s32 %s32, %s317
          %s319 = smul.addr %s30, 64
          %s320 = sadd.s32 %s318, %s319
          %s321 = smul.addr %s320, 128
          %s322 = scalar_lea.hbm %s2, %s321
          %s323 = sshll.u32 %s309, 4
          %s324 = int_to_ptr.vmem [resolvable:$true] %s323
          %329 = dma.hbm_to_vmem [thread:$0]  %s322, 256, %s324, %s306, 256, 128, 8
        $region28: #{tpu_custom_call.1} parent=15 // pred_fallthru
          _
        // Predicated region
        $region29: #{tpu_custom_call.1} parent=15 // pred_check
          %p330 = pneg %p168
        $region30: #{tpu_custom_call.1} parent=15 // pred_check_branch
          %332 = sbr.rel (%p330) target = $region32
        $region31: #{tpu_custom_call.1} parent=15 // pred_region
          %s333 = sand.u32 %s158, 1
          %s334 = scalar_lea.sflag [#allocation9], %s333
          %s335 = sand.u32 %s158, 1
          %s336 = smul.addr %s335, 12
          %s337 = scalar_lea.vmem [#allocation8], %s336
          %s339 = ssub.s32 192, 192
          %340 = vsyncadd %s334, %s339
          %s341 = smul.addr %s32, 64
          %s342 = scalar_lea.hbm %s3, %s341
          %s343 = sshll.u32 %s337, 4
          %s344 = int_to_ptr.vmem [resolvable:$true] %s343
          %349 = dma.hbm_to_vmem [thread:$0]  %s342, 192, %s344, %s334, 128, 64, 4
        $region32: #{tpu_custom_call.1} parent=15 // pred_fallthru
          _
        // Predicated region
        $region33: #{tpu_custom_call.1} parent=15 // pred_check
          %p350 = pneg %p194
        $region34: #{tpu_custom_call.1} parent=15 // pred_check_branch
          %352 = sbr.rel (%p350) target = $region36
        $region35: #{tpu_custom_call.1} parent=15 // pred_region
          %p353 = scmp.lt.s32.totalorder %s32, 1
          %s354 = scalar_select %p353, %s32, 1
          %s355 = scalar_lea.vmem %s4, %s354
        $region36: #{tpu_custom_call.1} parent=15 // pred_fallthru
          _
      $region16: #{tpu_custom_call.1} parent=5 // pred_fallthru
        _
      %p356 = scmp.le.s32.totalorder 1, %s23
      %p357 = scmp.lt.s32.totalorder %s23, 17
      %p358 = pnand %p356, %p357
      %p359 = pneg %p358
      // Predicated region
      $region37: #{tpu_custom_call.1} parent=5 // pred_check
        _
      $region38: #{tpu_custom_call.1} parent=5 // pred_check_branch
        %361 = sbr.rel (%p358) target = $region40
      $region39: #{tpu_custom_call.1} parent=5 // pred_region
        %s362 = ssub.s32 %s23, 1
        %s363 = sand.u32 %s59, 1
        %s364 = scalar_lea.sflag [#allocation3], %s363
        %s365 = sand.u32 %s59, 1
        %s366 = smul.addr %s365, 64
        %s367 = scalar_lea.vmem [#allocation2], %s366
        // Predicated region
        $region41: #{tpu_custom_call.1} parent=39 // pred_check
          %p368 = pneg %p72
        $region42: #{tpu_custom_call.1} parent=39 // pred_check_branch
          %370 = sbr.rel (%p368) target = $region44
        $region43: #{tpu_custom_call.1} parent=39 // pred_region
          %371 = dma.done %s364, 1024
        $region44: #{tpu_custom_call.1} parent=39 // pred_fallthru
          _
        %s372 = sand.u32 %s28, 1
        %s373 = scalar_lea.sflag [#allocation6], %s372
        %s374 = sand.u32 %s97, 1
        %s375 = smul.addr %s374, 16
        %s376 = scalar_lea.vmem [#allocation5], %s375
        // Predicated region
        $region45: #{tpu_custom_call.1} parent=39 // pred_check
          %p377 = pneg %p110
        $region46: #{tpu_custom_call.1} parent=39 // pred_check_branch
          %379 = sbr.rel (%p377) target = $region48
        $region47: #{tpu_custom_call.1} parent=39 // pred_region
          %380 = dma.done %s373, 256
        $region48: #{tpu_custom_call.1} parent=39 // pred_fallthru
          _
        %s381 = sand.u32 %s28, 1
        %s382 = scalar_lea.sflag [#allocation6], %s381
        %s383 = sand.u32 %s135, 1
        %s384 = smul.addr %s383, 16
        %s385 = scalar_lea.vmem [#allocation7], %s384
        // Predicated region
        $region49: #{tpu_custom_call.1} parent=39 // pred_check
          %p386 = pneg %p148
        $region50: #{tpu_custom_call.1} parent=39 // pred_check_branch
          %388 = sbr.rel (%p386) target = $region52
        $region51: #{tpu_custom_call.1} parent=39 // pred_region
          %389 = dma.done %s382, 256
        $region52: #{tpu_custom_call.1} parent=39 // pred_fallthru
          _
        %s390 = sand.u32 %s161, 1
        %s391 = scalar_lea.sflag [#allocation9], %s390
        %s392 = sand.u32 %s161, 1
        %s393 = smul.addr %s392, 12
        %s394 = scalar_lea.vmem [#allocation8], %s393
        // Predicated region
        $region53: #{tpu_custom_call.1} parent=39 // pred_check
          %p395 = pneg %p174
        $region54: #{tpu_custom_call.1} parent=39 // pred_check_branch
          %397 = sbr.rel (%p395) target = $region56
        $region55: #{tpu_custom_call.1} parent=39 // pred_region
          %398 = dma.done %s391, 192
        $region56: #{tpu_custom_call.1} parent=39 // pred_fallthru
          _
        %s399 = sand.u32 %s59, 1
        %s400 = scalar_lea.sflag [#allocation3], %s399
        %s401 = sand.u32 %s59, 1
        %s402 = smul.addr %s401, 64
        %s403 = scalar_lea.vmem [#allocation2], %s402
        %p404 = pneg %p72
        %p405 = pneg %p69
        %s406 = sand.u32 %s28, 1
        %s407 = scalar_lea.sflag [#allocation6], %s406
        %s408 = sand.u32 %s97, 1
        %s409 = smul.addr %s408, 16
        %s410 = scalar_lea.vmem [#allocation5], %s409
        %p411 = pneg %p110
        %p412 = pneg %p107
        %s413 = sand.u32 %s28, 1
        %s414 = scalar_lea.sflag [#allocation6], %s413
        %s415 = sand.u32 %s135, 1
        %s416 = smul.addr %s415, 16
        %s417 = scalar_lea.vmem [#allocation7], %s416
        %p418 = pneg %p148
        %p419 = pneg %p145
        %s420 = sand.u32 %s161, 1
        %s421 = scalar_lea.sflag [#allocation9], %s420
        %s422 = sand.u32 %s161, 1
        %s423 = smul.addr %s422, 12
        %s424 = scalar_lea.vmem [#allocation8], %s423
        %p425 = pneg %p174
        %p426 = pneg %p171
        %p427 = scmp.lt.s32.totalorder %s35, 1
        %s428 = scalar_select %p427, %s35, 1
        %s429 = scalar_lea.vmem %s4, %s428
        %p430 = pneg %p200
        %p431 = pneg %p197
        %p432 = pneg %p230
        %p433 = pneg %p227
        %s434 = sand.u32 %s217, 1
        %s435 = scalar_lea.sflag [#allocation4], %s434
        %s436 = sand.u32 %s217, 1
        %s437 = smul.addr %s436, 64
        %s438 = scalar_lea.vmem [#allocation10], %s437
        %s439 = smul.u32 4, %s34
        %s440 = smul.u32 %s34, 4
        %s441 = ssub.s32 %s440, 1
        %p442 = scmp.gt.s32.totalorder %s441, 0
        %s443 = scalar_select %p442, %s441, 0
        %s444 = smul.u32 %s34, 4
        %s445 = sadd.s32 %s444, 4
        %p446 = scmp.lt.s32.totalorder %s445, 15
        %s447 = scalar_select %p446, %s445, 15
        %p448 = scmp.lt.s32.totalorder %s35, 1
        %s449 = scalar_select %p448, %s35, 1
        %s450 = scalar_lea.vmem %s4, %s449
        %s451 = smul.u32 4, %s34
        %v452 = vld [vmem:[%s376] sm:$0xff]
        %v453 = vld [vmem:[%s376 + $0x8] sm:$0xff]
        %p454 = scmp.gt.s32.totalorder %s34, 0
        %s455 = scalar_select %p454, 1, 0
        %s456 = scvt.s32.f32 %s455
        %v457 = vstv %s456
        %v458 = vmul.f32 %v452, %v457
        %v459 = vmul.f32 %v453, %v457
        %v460 = vld [vmem:[%s385] sm:$0xff]
        %v461 = vld [vmem:[%s385 + $0x8] sm:$0xff]
        %p462 = scmp.lt.s32.totalorder %s34, 3
        %s463 = scalar_select %p462, 1, 0
        %s464 = scvt.s32.f32 %s463
        %v465 = vstv %s464
        %v466 = vmul.f32 %v460, %v465
        %v467 = vmul.f32 %v461, %v465
        %v468 = vld [vmem:[%s367] sm:$0xff]
        %v469 = vld [vmem:[%s367 + $0x8] sm:$0xff]
        %v470 = vld [vmem:[%s367 + $0x10] sm:$0xff]
        %v471 = vld [vmem:[%s367 + $0x18] sm:$0xff]
        %v472 = vld [vmem:[%s367 + $0x20] sm:$0xff]
        %v473 = vld [vmem:[%s367 + $0x28] sm:$0xff]
        %v474 = vld [vmem:[%s367 + $0x30] sm:$0xff]
        %v475 = vld [vmem:[%s367 + $0x38] sm:$0xff]
        %v476 = vlaneseq
        %v477 = vshrl.u32 %v476, 7
        %v478 = vadd.s32 %v477, 8
        %vm479 = vcmp.ge.s32.totalorder %v477, 1
        %vm480 = vcmp.ge.s32.totalorder %v478, 1
        %v481 = vsel %vm479, 1, 0
        %v482 = vsel %vm480, 1, 0
        %v483 = vcvt.s32.f32 %v481
        %v484 = vcvt.s32.f32 %v482
        %vm485 = vcmp.le.s32.totalorder %v477, 14
        %vm486 = vcmp.le.s32.totalorder %v478, 14
        %v487 = vsel %vm485, 1, 0
        %v488 = vsel %vm486, 1, 0
        %v489 = vcvt.s32.f32 %v487
        %v490 = vcvt.s32.f32 %v488
        %v491 = vrot.slane %v468, 7
        %v492 = vrot.slane %v470, 7
        %v493 = vrot.slane %v472, 7
        %v494 = vrot.slane %v474, 7
        %v495 = vrot.slane %v469, 7
        %v496 = vrot.slane %v471, 7
        %v497 = vrot.slane %v473, 7
        %v498 = vrot.slane %v475, 7
        %vm499 = vcmp.lt.s32.totalorder %v477, 1
        %v500 = vsel %vm499, %v491, %v495
        %v501 = vsel %vm499, %v492, %v496
        %v502 = vsel %vm499, %v493, %v497
        %v503 = vsel %vm499, %v494, %v498
        %v504 = vsel %vm499, %v495, %v491
        %v505 = vsel %vm499, %v496, %v492
        %v506 = vsel %vm499, %v497, %v493
        %v507 = vsel %vm499, %v498, %v494
        %v508 = vmul.f32 %v504, %v483
        %v509 = vmul.f32 %v500, %v484
        %v510 = vmul.f32 %v505, %v483
        %v511 = vmul.f32 %v501, %v484
        %v512 = vmul.f32 %v506, %v483
        %v513 = vmul.f32 %v502, %v484
        %v514 = vmul.f32 %v507, %v483
        %v515 = vmul.f32 %v503, %v484
        %v516 = vrot.slane %v468, 1
        %v517 = vrot.slane %v470, 1
        %v518 = vrot.slane %v472, 1
        %v519 = vrot.slane %v474, 1
        %v520 = vrot.slane %v469, 1
        %v521 = vrot.slane %v471, 1
        %v522 = vrot.slane %v473, 1
        %v523 = vrot.slane %v475, 1
        %vm524 = vcmp.lt.s32.totalorder %v477, 7
        %v525 = vsel %vm524, %v516, %v520
        %v526 = vsel %vm524, %v517, %v521
        %v527 = vsel %vm524, %v518, %v522
        %v528 = vsel %vm524, %v519, %v523
        %v529 = vsel %vm524, %v520, %v516
        %v530 = vsel %vm524, %v521, %v517
        %v531 = vsel %vm524, %v522, %v518
        %v532 = vsel %vm524, %v523, %v519
        %v533 = vmul.f32 %v525, %v489
        %v534 = vmul.f32 %v529, %v490
        %v535 = vmul.f32 %v526, %v489
        %v536 = vmul.f32 %v530, %v490
        %v537 = vmul.f32 %v527, %v489
        %v538 = vmul.f32 %v531, %v490
        %v539 = vmul.f32 %v528, %v489
        %v540 = vmul.f32 %v532, %v490
        %v541 = vrot.slane %v458, 7
        %v542 = vrot.slane %v459, 7
        %v543 = vsel %vm499, %v541, %v542
        %v544 = vsel %vm499, %v542, %v541
        %v545 = vmul.f32 %v544, %v483
        %v546 = vmul.f32 %v543, %v484
        %v547 = vrot.slane %v458, 1
        %v548 = vrot.slane %v459, 1
        %v549 = vsel %vm524, %v547, %v548
        %v550 = vsel %vm524, %v548, %v547
        %v551 = vmul.f32 %v549, %v489
        %v552 = vmul.f32 %v550, %v490
        %v553 = vrot.slane %v466, 7
        %v554 = vrot.slane %v467, 7
        %v555 = vsel %vm499, %v553, %v554
        %v556 = vsel %vm499, %v554, %v553
        %v557 = vmul.f32 %v556, %v483
        %v558 = vmul.f32 %v555, %v484
        %v559 = vrot.slane %v466, 1
        %v560 = vrot.slane %v467, 1
        %v561 = vsel %vm524, %v559, %v560
        %v562 = vsel %vm524, %v560, %v559
        %v563 = vmul.f32 %v561, %v489
        %v564 = vmul.f32 %v562, %v490
        %v565 = vld [vmem:[%s394] sm:$0x7]
        %v566 = vld [vmem:[%s394 + $0x4] sm:$0x7]
        %v567 = vld [vmem:[%s394 + $0x8] sm:$0x7]
        %v568 = vld [vmem:[%s450] sm:$0x1]
        %v569 = vlaneseq
        %v570 = vshrl.u32 %v569, 7
        %v571 = vsub.s32 0, %v570
        %v572 = vrot.slane %v565, %v571
        %v573 = vmul.f32 %v545, %v572
        %v574 = vmul.f32 %v546, %v572
        %v575 = vlaneseq
        %v576 = vshrl.u32 %v575, 7
        %v577 = vsub.s32 1, %v576
        %v578 = vrot.slane %v565, %v577
        %v579 = vmul.f32 %v458, %v578
        %v580 = vmul.f32 %v459, %v578
        %v581 = vadd.f32 %v573, %v579
        %v582 = vadd.f32 %v574, %v580
        %v583 = vlaneseq
        %v584 = vshrl.u32 %v583, 7
        %v585 = vsub.s32 2, %v584
        %v586 = vrot.slane %v565, %v585
        %v587 = vmul.f32 %v551, %v586
        %v588 = vmul.f32 %v552, %v586
        %v589 = vadd.f32 %v581, %v587
        %v590 = vadd.f32 %v582, %v588
        %v592 = vlaneseq
        %v593 = vshrl.u32 %v592, 7
        %v594 = vsub.s32 0, %v593
        %v595 = vrot.slane %v568, %v594
        %v597 = vadd.f32 %v595, %v589
        %v598 = vadd.f32 %v595, %v590
        %v599 = vlaneseq
        %v600 = vshrl.u32 %v599, 7
        %v601 = vsub.s32 0, %v600
        %v602 = vrot.slane %v566, %v601
        %v603 = vmul.f32 %v508, %v602
        %v604 = vmul.f32 %v509, %v602
        %v605 = vlaneseq
        %v606 = vshrl.u32 %v605, 7
        %v607 = vsub.s32 1, %v606
        %v608 = vrot.slane %v566, %v607
        %v609 = vmul.f32 %v468, %v608
        %v610 = vmul.f32 %v469, %v608
        %v611 = vadd.f32 %v603, %v609
        %v612 = vadd.f32 %v604, %v610
        %v613 = vlaneseq
        %v614 = vshrl.u32 %v613, 7
        %v615 = vsub.s32 2, %v614
        %v616 = vrot.slane %v566, %v615
        %v617 = vmul.f32 %v533, %v616
        %v618 = vmul.f32 %v534, %v616
        %v619 = vadd.f32 %v611, %v617
        %v620 = vadd.f32 %v612, %v618
        %v621 = vadd.f32 %v597, %v619
        %v622 = vadd.f32 %v598, %v620
        %v623 = vlaneseq
        %v624 = vshrl.u32 %v623, 7
        %v625 = vsub.s32 0, %v624
        %v626 = vrot.slane %v567, %v625
        %v627 = vmul.f32 %v510, %v626
        %v628 = vmul.f32 %v511, %v626
        %v629 = vlaneseq
        %v630 = vshrl.u32 %v629, 7
        %v631 = vsub.s32 1, %v630
        %v632 = vrot.slane %v567, %v631
        %v633 = vmul.f32 %v470, %v632
        %v634 = vmul.f32 %v471, %v632
        %v635 = vadd.f32 %v627, %v633
        %v636 = vadd.f32 %v628, %v634
        %v637 = vlaneseq
        %v638 = vshrl.u32 %v637, 7
        %v639 = vsub.s32 2, %v638
        %v640 = vrot.slane %v567, %v639
        %v641 = vmul.f32 %v535, %v640
        %v642 = vmul.f32 %v536, %v640
        %v643 = vadd.f32 %v635, %v641
        %v644 = vadd.f32 %v636, %v642
        %v645 = vadd.f32 %v621, %v643
        %v646 = vadd.f32 %v622, %v644
        %647 = vst [vmem:[%s438] sm:$0xff] %v645
        %648 = vst [vmem:[%s438 + $0x8] sm:$0xff] %v646
        %v649 = vmul.f32 %v508, %v572
        %v650 = vmul.f32 %v509, %v572
        %v651 = vmul.f32 %v510, %v572
        %v652 = vmul.f32 %v511, %v572
        %v653 = vmul.f32 %v468, %v578
        %v654 = vmul.f32 %v469, %v578
        %v655 = vmul.f32 %v470, %v578
        %v656 = vmul.f32 %v471, %v578
        %v657 = vadd.f32 %v649, %v653
        %v658 = vadd.f32 %v650, %v654
        %v659 = vadd.f32 %v651, %v655
        %v660 = vadd.f32 %v652, %v656
        %v661 = vmul.f32 %v533, %v586
        %v662 = vmul.f32 %v534, %v586
        %v663 = vmul.f32 %v535, %v586
        %v664 = vmul.f32 %v536, %v586
        %v665 = vadd.f32 %v657, %v661
        %v666 = vadd.f32 %v658, %v662
        %v667 = vadd.f32 %v659, %v663
        %v668 = vadd.f32 %v660, %v664
        %v669 = vadd.f32 %v595, %v665
        %v670 = vadd.f32 %v595, %v666
        %v671 = vadd.f32 %v595, %v667
        %v672 = vadd.f32 %v595, %v668
        %v673 = vmul.f32 %v510, %v602
        %v674 = vmul.f32 %v511, %v602
        %v675 = vmul.f32 %v512, %v602
        %v676 = vmul.f32 %v513, %v602
        %v677 = vmul.f32 %v470, %v608
        %v678 = vmul.f32 %v471, %v608
        %v679 = vmul.f32 %v472, %v608
        %v680 = vmul.f32 %v473, %v608
        %v681 = vadd.f32 %v673, %v677
        %v682 = vadd.f32 %v674, %v678
        %v683 = vadd.f32 %v675, %v679
        %v684 = vadd.f32 %v676, %v680
        %v685 = vmul.f32 %v535, %v616
        %v686 = vmul.f32 %v536, %v616
        %v687 = vmul.f32 %v537, %v616
        %v688 = vmul.f32 %v538, %v616
        %v689 = vadd.f32 %v681, %v685
        %v690 = vadd.f32 %v682, %v686
        %v691 = vadd.f32 %v683, %v687
        %v692 = vadd.f32 %v684, %v688
        %v693 = vadd.f32 %v669, %v689
        %v694 = vadd.f32 %v670, %v690
        %v695 = vadd.f32 %v671, %v691
        %v696 = vadd.f32 %v672, %v692
        %v697 = vmul.f32 %v512, %v626
        %v698 = vmul.f32 %v513, %v626
        %v699 = vmul.f32 %v514, %v626
        %v700 = vmul.f32 %v515, %v626
        %v701 = vmul.f32 %v472, %v632
        %v702 = vmul.f32 %v473, %v632
        %v703 = vmul.f32 %v474, %v632
        %v704 = vmul.f32 %v475, %v632
        %v705 = vadd.f32 %v697, %v701
        %v706 = vadd.f32 %v698, %v702
        %v707 = vadd.f32 %v699, %v703
        %v708 = vadd.f32 %v700, %v704
        %v709 = vmul.f32 %v537, %v640
        %v710 = vmul.f32 %v538, %v640
        %v711 = vmul.f32 %v539, %v640
        %v712 = vmul.f32 %v540, %v640
        %v713 = vadd.f32 %v705, %v709
        %v714 = vadd.f32 %v706, %v710
        %v715 = vadd.f32 %v707, %v711
        %v716 = vadd.f32 %v708, %v712
        %v717 = vadd.f32 %v693, %v713
        %v718 = vadd.f32 %v694, %v714
        %v719 = vadd.f32 %v695, %v715
        %v720 = vadd.f32 %v696, %v716
        %s721 = scalar_lea.vmem %s438, 16 [#allocation10]
        %722 = vst [vmem:[%s721] sm:$0xff] %v717
        %723 = vst [vmem:[%s721 + $0x8] sm:$0xff] %v718
        %724 = vst [vmem:[%s721 + $0x10] sm:$0xff] %v719
        %725 = vst [vmem:[%s721 + $0x18] sm:$0xff] %v720
        %v726 = vmul.f32 %v512, %v572
        %v727 = vmul.f32 %v513, %v572
        %v728 = vmul.f32 %v472, %v578
        %v729 = vmul.f32 %v473, %v578
        %v730 = vadd.f32 %v726, %v728
        %v731 = vadd.f32 %v727, %v729
        %v732 = vmul.f32 %v537, %v586
        %v733 = vmul.f32 %v538, %v586
        %v734 = vadd.f32 %v730, %v732
        %v735 = vadd.f32 %v731, %v733
        %v736 = vadd.f32 %v595, %v734
        %v737 = vadd.f32 %v595, %v735
        %v738 = vmul.f32 %v514, %v602
        %v739 = vmul.f32 %v515, %v602
        %v740 = vmul.f32 %v474, %v608
        %v741 = vmul.f32 %v475, %v608
        %v742 = vadd.f32 %v738, %v740
        %v743 = vadd.f32 %v739, %v741
        %v744 = vmul.f32 %v539, %v616
        %v745 = vmul.f32 %v540, %v616
        %v746 = vadd.f32 %v742, %v744
        %v747 = vadd.f32 %v743, %v745
        %v748 = vadd.f32 %v736, %v746
        %v749 = vadd.f32 %v737, %v747
        %v750 = vmul.f32 %v557, %v626
        %v751 = vmul.f32 %v558, %v626
        %v752 = vmul.f32 %v466, %v632
        %v753 = vmul.f32 %v467, %v632
        %v754 = vadd.f32 %v750, %v752
        %v755 = vadd.f32 %v751, %v753
        %v756 = vmul.f32 %v563, %v640
        %v757 = vmul.f32 %v564, %v640
        %v758 = vadd.f32 %v754, %v756
        %v759 = vadd.f32 %v755, %v757
        %v760 = vadd.f32 %v748, %v758
        %v761 = vadd.f32 %v749, %v759
        %s762 = scalar_lea.vmem %s438, 48 [#allocation10]
        %763 = vst [vmem:[%s762] sm:$0xff] %v760
        %764 = vst [vmem:[%s762 + $0x8] sm:$0xff] %v761
        %s765 = sand.u32 %s217, 1
        %s766 = scalar_lea.sflag [#allocation4], %s765
        %s767 = sand.u32 %s217, 1
        %s768 = smul.addr %s767, 64
        %s769 = scalar_lea.vmem [#allocation10], %s768
        // Predicated region
        $region57: #{tpu_custom_call.1} parent=39 // pred_check
          %p770 = pneg %p227
        $region58: #{tpu_custom_call.1} parent=39 // pred_check_branch
          %772 = sbr.rel (%p770) target = $region60
        $region59: #{tpu_custom_call.1} parent=39 // pred_region
          %s773 = smul.u32 4, %s34
          %s775 = ssub.s32 1024, 1024
          %776 = vsyncadd %s766, %s775
          %s777 = smul.addr %s773, 4
          %s778 = sadd.s32 %s35, %s777
          %s779 = smul.addr %s33, 64
          %s780 = sadd.s32 %s778, %s779
          %s781 = smul.addr %s780, 128
          %s782 = scalar_lea.hbm %s5, %s781
          %s783 = sshll.u32 %s769, 4
          %s784 = int_to_ptr.vmem [resolvable:$true] %s783
          %789 = dma.vmem_to_hbm [thread:$0]  %s784, 1024, %s782, %s766, 128, 256, 8
        $region60: #{tpu_custom_call.1} parent=39 // pred_fallthru
          _
      $region40: #{tpu_custom_call.1} parent=5 // pred_fallthru
        _
      %p790 = scmp.le.s32.totalorder 2, %s23
      // Predicated region
      $region61: #{tpu_custom_call.1} parent=5 // pred_check
        %p791 = pneg %p790
      $region62: #{tpu_custom_call.1} parent=5 // pred_check_branch
        %793 = sbr.rel (%p791) target = $region64
      $region63: #{tpu_custom_call.1} parent=5 // pred_region
        %s794 = ssub.s32 %s23, 2
        // Predicated region
        $region65: #{tpu_custom_call.1} parent=63 // pred_check
          %p795 = pneg %p233
        $region66: #{tpu_custom_call.1} parent=63 // pred_check_branch
          %797 = sbr.rel (%p795) target = $region68
        $region67: #{tpu_custom_call.1} parent=63 // pred_region
          %s798 = sand.u32 %s218, 1
          %s799 = scalar_lea.sflag [#allocation4], %s798
          %s800 = sand.u32 %s218, 1
          %s801 = smul.addr %s800, 64
          %s802 = scalar_lea.vmem [#allocation10], %s801
          %803 = dma.done %s799, 1024
        $region68: #{tpu_custom_call.1} parent=63 // pred_fallthru
          _
      $region64: #{tpu_custom_call.1} parent=5 // pred_fallthru
        _
    $region6: #{tpu_custom_call.1} parent=1 // loop_footer
      %s27 = sadd.s32 1, %s23
    $region7: #{tpu_custom_call.1} parent=1 // loop_footer_branch
      %22 = sbr.rel target = $region3
    $region8: #{tpu_custom_call.1} parent=1 // loop_exit
      _
    %804 = vsyncpa [#allocation3], 1
    %s805 = scalar_lea.sflag [#allocation3], 1
    %806 = vsyncpa %s805, 1
    %807 = vsyncpa [#allocation6], 1
    %s808 = scalar_lea.sflag [#allocation6], 1
    %809 = vsyncpa %s808, 1
    %810 = vsyncpa [#allocation9], 1
    %s811 = scalar_lea.sflag [#allocation9], 1
    %812 = vsyncpa %s811, 1
    %813 = vsyncpa [#allocation4], 1
    %s814 = scalar_lea.sflag [#allocation4], 1
    %815 = vsyncpa %s814, 1

</llo_original>
